<compile_context>
chip_gen: v7x
topology: tpu7x:2x2x1
jax: 0.10.0
libtpu: 0.0.40
codegen_flags: <defaults>
</compile_context>

<pallas_src>
import jax
import jax.numpy as jnp
from jax.experimental import pallas as pl
from jax.experimental.pallas import tpu as pltpu

_LANE = 128      # lane width (last dim)
_SUBLANE = 8     # f32 sublane width (second-to-last dim)
_MIN_VMEM_LIMIT = 32 * 1024 * 1024


def _cdiv(a, b):
    return (a + b - 1) // b


def _round_up(n, m):
    return _cdiv(n, m) * m


def _pad2d(a, rows, cols, dtype):
    out = jnp.zeros((rows, cols), dtype)
    return out.at[:a.shape[0], :a.shape[1]].set(a.astype(dtype))


def _vmem_budget():
    """Usable per-core VMEM (bytes), with headroom for compiler scratch."""
    try:
        cap = pltpu.get_tpu_info().vmem_capacity_bytes
    except Exception:
        cap = 64 * 1024 * 1024          # v7x worst case per TensorCore
    return int(cap * 0.9)


def _spec(shape, index_map, *, resident=False):
    """BlockSpec; constant-index (resident) operands get a single buffer."""
    if resident:
        try:
            return pl.BlockSpec(shape, index_map,
                                pipeline_mode=pl.Buffered(1))
        except (TypeError, AttributeError):
            pass
    return pl.BlockSpec(shape, index_map)


# ---------------------------------------------------------------------------
# Kernels
# ---------------------------------------------------------------------------

def _rfl_full_kernel(x_ref, r_ref, wi_ref, wr_ref, aux_ref, bg_ref, out_ref):
    """Fused forward: weights fully VMEM-resident, one pass over the batch."""
    aux = aux_ref[...]                      # (4, Hp) f32: [bi; br; wg_h; wg_e]
    h = jnp.tanh(jnp.dot(x_ref[...], wi_ref[...],
                         preferred_element_type=jnp.float32) + aux[0:1, :])
    echo = jnp.tanh(jnp.dot(r_ref[...], wr_ref[...],
                            preferred_element_type=jnp.float32) + aux[1:2, :])
    # Gate logit: concat([h, echo]) @ Wg + bg fused into one cross-lane sum.
    logit = jnp.sum(h * aux[2:3, :] + echo * aux[3:4, :],
                    axis=-1, keepdims=True) + bg_ref[0, 0]
    w = jax.nn.sigmoid(logit)               # (TB, 1), broadcasts over lanes
    out_ref[...] = (echo + (h - echo) * w).astype(out_ref.dtype)


def _rfl_proj_only_kernel(x_ref, wi_ref, bi_ref, out_ref):
    out_ref[...] = jnp.tanh(
        jnp.dot(x_ref[...], wi_ref[...], preferred_element_type=jnp.float32)
        + bi_ref[...]).astype(out_ref.dtype)


def _rfl_pass1_kernel(x_ref, r_ref, wi_ref, wr_ref, aux_ref, bg_ref,
                      h_ref, echo_ref, logit_ref):
    """Column-tiled pass 1: per hidden-column tile compute h / echo, store
    them, and accumulate the gate logit (output block is constant across the
    'arbitrary' column axis so it stays VMEM-resident)."""
    j = pl.program_id(1)
    aux = aux_ref[...]                      # (4, Hn) f32 column of aux
    h = jnp.tanh(jnp.dot(x_ref[...], wi_ref[...],
                         preferred_element_type=jnp.float32) + aux[0:1, :])
    echo = jnp.tanh(jnp.dot(r_ref[...], wr_ref[...],
                            preferred_element_type=jnp.float32) + aux[1:2, :])
    h_ref[...] = h.astype(h_ref.dtype)
    echo_ref[...] = echo.astype(echo_ref.dtype)
    partial = jnp.sum(h * aux[2:3, :] + echo * aux[3:4, :],
                      axis=-1, keepdims=True)

    @pl.when(j == 0)
    def _():
        logit_ref[...] = jnp.zeros_like(logit_ref) + bg_ref[0, 0]

    logit_ref[...] += partial


def _rfl_blend_kernel(h_ref, echo_ref, logit_ref, out_ref):
    """Column-tiled pass 2: blend h / echo with the per-row gate."""
    w = jax.nn.sigmoid(logit_ref[...])
    h = h_ref[...].astype(jnp.float32)
    echo = echo_ref[...].astype(jnp.float32)
    out_ref[...] = (echo + (h - echo) * w).astype(out_ref.dtype)


# ---------------------------------------------------------------------------
# Wrapper
# ---------------------------------------------------------------------------

class RFLBlockPallas:
    """Pallas-backed RFLBlock with deterministically initialized parameters."""

    def __init__(self, input_dim, hidden_dim, key,
                 param_dtype=jnp.bfloat16, out_dtype=None,
                 batch_tile=512, hidden_tile=None):
        self.input_dim = input_dim
        self.hidden_dim = hidden_dim
        self.param_dtype = jnp.dtype(param_dtype)
        self.out_dtype = (jnp.dtype(out_dtype) if out_dtype is not None
                          else jnp.dtype(jnp.float32))
        self.batch_tile = max(_SUBLANE, _round_up(batch_tile, _SUBLANE))
        self.hidden_tile = hidden_tile
        self.vmem_budget = _vmem_budget()

        k = jax.random.split(key, 6)
        # PyTorch nn.Linear default init: U(-1/sqrt(fan_in), 1/sqrt(fan_in)).
        b_in = 1.0 / jnp.sqrt(float(input_dim))
        b_h = 1.0 / jnp.sqrt(float(hidden_dim))
        b_g = 1.0 / jnp.sqrt(float(2 * hidden_dim))

        # Raw f32 parameters, pre-transposed to (in, out) — used by _reference.
        self.Wi = jax.random.uniform(k[0], (input_dim, hidden_dim),
                                     jnp.float32, -b_in, b_in)
        self.bi = jax.random.uniform(k[1], (1, hidden_dim),
                                     jnp.float32, -b_in, b_in)
        self.Wr = jax.random.uniform(k[2], (hidden_dim, hidden_dim),
                                     jnp.float32, -b_h, b_h)
        self.br = jax.random.uniform(k[3], (1, hidden_dim),
                                     jnp.float32, -b_h, b_h)
        Wg = jax.random.uniform(k[4], (2 * hidden_dim, 1),
                                jnp.float32, -b_g, b_g)
        self.Wg_h = Wg[:hidden_dim, 0].reshape(1, hidden_dim)
        self.Wg_e = Wg[hidden_dim:, 0].reshape(1, hidden_dim)
        self.bg = jax.random.uniform(k[5], (1, 1), jnp.float32, -b_g, b_g)

        # Lane-aligned padded parameters; zero padding keeps the math exact
        # (padded hidden columns give tanh(0)=0 and zero gate weights).
        self.input_pad = _round_up(input_dim, _LANE)
        self.hidden_pad = _round_up(hidden_dim, _LANE)
        Ip, Hp = self.input_pad, self.hidden_pad
        self.Wi_p = _pad2d(self.Wi, Ip, Hp, self.param_dtype)
        self.Wr_p = _pad2d(self.Wr, Hp, Hp, self.param_dtype)
        self.bi_p = _pad2d(self.bi, 1, Hp, jnp.float32)
        # bi / br / Wg_h / Wg_e packed into ONE f32 operand (one VMEM block).
        aux = jnp.zeros((4, Hp), jnp.float32)
        aux = aux.at[0, :hidden_dim].set(self.bi[0])
        aux = aux.at[1, :hidden_dim].set(self.br[0])
        aux = aux.at[2, :hidden_dim].set(self.Wg_h[0])
        aux = aux.at[3, :hidden_dim].set(self.Wg_e[0])
        self.aux_p = aux

    # ---- sizing helpers ----------------------------------------------------

    def _estimate_vmem_bytes(self, TB, Hn, has_res):
        it = self.param_dtype.itemsize
        ot = max(self.out_dtype.itemsize, it)
        Ip, Hp = self.input_pad, self.hidden_pad
        resident = (Hn == Hp)
        wbuf = 1 if resident else 2                 # Buffered(1) vs double buf
        w_rows = Ip + (Hp if has_res else 0)
        weights = wbuf * (w_rows * Hn * it + 8 * Hn * 4)     # Wi/Wr cols + aux
        rows = 2 * TB * (Ip + (Hp if has_res else 0)) * it   # x (+ r) tiles
        n_out = 1 if (resident or not has_res) else 2        # out vs h + echo
        outs = 2 * TB * Hn * n_out * ot + 2 * TB * 4         # (+ logit column)
        scratch = (3 if has_res else 1) * TB * Hn * 4 + (2 << 20)
        return weights + rows + outs + scratch

    def _choose_batch_tile(self, B, has_res):
        n_tiles = _cdiv(B, self.batch_tile)
        if n_tiles == 1 and B >= 2 * _SUBLANE:
            n_tiles = 2            # give v7x's second TensorCore a block
        TB = _round_up(_cdiv(B, n_tiles), _SUBLANE)
        # Shrink if even the narrowest column tile would not fit VMEM.
        while TB > _SUBLANE and \
                self._estimate_vmem_bytes(TB, _LANE, has_res) > self.vmem_budget:
            TB = _round_up(TB // 2, _SUBLANE)
        return TB

    def _choose_hidden_tile(self, TB, has_res):
        Hp = self.hidden_pad
        k = Hp // _LANE
        if self.hidden_tile is not None:
            kn = max(1, min(_round_up(self.hidden_tile, _LANE) // _LANE, k))
            while k % kn:          # tile must divide the padded hidden dim
                kn -= 1
            return kn * _LANE
        Hn = _LANE
        for nc in range(1, k + 1):  # largest divisor-tile that fits the budget
            if k % nc:
                continue
            Hn = (k // nc) * _LANE
            if self._estimate_vmem_bytes(TB, Hn, has_res) <= self.vmem_budget:
                break
        return Hn

    def _compiler_params(self, TB, Hn, has_res, dims):
        est = self._estimate_vmem_bytes(TB, Hn, has_res)
        vlim = int(min(self.vmem_budget, max(_MIN_VMEM_LIMIT, est)))
        return pltpu.CompilerParams(dimension_semantics=dims,
                                    vmem_limit_bytes=vlim)

    def _prep(self, a, rows_p, cols_p):
        """Pad/cast only when needed (skip the extra HBM round trip)."""
        if a.shape == (rows_p, cols_p) and a.dtype == self.param_dtype:
            return a
        out = jnp.zeros((rows_p, cols_p), self.param_dtype)
        return out.at[:a.shape[0], :a.shape[1]].set(a.astype(self.param_dtype))

    # ---- forward ------------------------------------------------------------

    def __call__(self, x, past_resonance=None):
        B = x.shape[0]
        Ip, Hp = self.input_pad, self.hidden_pad
        has_res = past_resonance is not None

        TB = self._choose_batch_tile(B, has_res)
        Bp = _round_up(B, TB)
        nb = Bp // TB
        Hn = self._choose_hidden_tile(TB, has_res)
        nc = Hp // Hn

        x_p = self._prep(x, Bp, Ip)
        out_shape_full = jax.ShapeDtypeStruct((Bp, Hp), self.out_dtype)

        if not has_res:
            resident = (nc == 1)
            out = pl.pallas_call(
                _rfl_proj_only_kernel,
                out_shape=out_shape_full,
                grid=(nb, nc),
                in_specs=[
                    _spec((TB, Ip), lambda i, j: (i, 0)),
                    _spec((Ip, Hn), lambda i, j: (0, j), resident=resident),
                    _spec((1, Hn), lambda i, j: (0, j), resident=resident),
                ],
                out_specs=pl.BlockSpec((TB, Hn), lambda i, j: (i, j)),
                compiler_params=self._compiler_params(
                    TB, Hn, False, ("parallel", "parallel")),
            )(x_p, self.Wi_p, self.bi_p)
        else:
            r_p = self._prep(past_resonance, Bp, Hp)
            if nc == 1:
                # Fused single pass: Wi / Wr / aux single-buffered and
                # VMEM-resident across the whole (pipelined) batch grid.
                out = pl.pallas_call(
                    _rfl_full_kernel,
                    out_shape=out_shape_full,
                    grid=(nb,),
                    in_specs=[
                        _spec((TB, Ip), lambda i: (i, 0)),
                        _spec((TB, Hp), lambda i: (i, 0)),
                        _spec((Ip, Hp), lambda i: (0, 0), resident=True),
                        _spec((Hp, Hp), lambda i: (0, 0), resident=True),
                        _spec((4, Hp), lambda i: (0, 0), resident=True),
                        pl.BlockSpec((1, 1), lambda i: (0, 0),
                                     memory_space=pltpu.MemorySpace.SMEM),
                    ],
                    out_specs=pl.BlockSpec((TB, Hp), lambda i: (i, 0)),
                    compiler_params=self._compiler_params(
                        TB, Hp, True, ("parallel",)),
                )(x_p, r_p, self.Wi_p, self.Wr_p, self.aux_p, self.bg)
            else:
                # Column-tiled two-pass fallback: weights too large for VMEM
                # (e.g. big hidden_dim on v7x's 64 MiB per-core VMEM).
                h_i, echo_i, logit = pl.pallas_call(
                    _rfl_pass1_kernel,
                    out_shape=(
                        jax.ShapeDtypeStruct((Bp, Hp), self.param_dtype),
                        jax.ShapeDtypeStruct((Bp, Hp), self.param_dtype),
                        jax.ShapeDtypeStruct((Bp, 1), jnp.float32),
                    ),
                    grid=(nb, nc),
                    in_specs=[
                        _spec((TB, Ip), lambda i, j: (i, 0)),
                        _spec((TB, Hp), lambda i, j: (i, 0)),
                        _spec((Ip, Hn), lambda i, j: (0, j)),
                        _spec((Hp, Hn), lambda i, j: (0, j)),
                        _spec((4, Hn), lambda i, j: (0, j)),
                        pl.BlockSpec((1, 1), lambda i, j: (0, 0),
                                     memory_space=pltpu.MemorySpace.SMEM),
                    ],
                    out_specs=(
                        pl.BlockSpec((TB, Hn), lambda i, j: (i, j)),
                        pl.BlockSpec((TB, Hn), lambda i, j: (i, j)),
                        pl.BlockSpec((TB, 1), lambda i, j: (i, 0)),
                    ),
                    compiler_params=self._compiler_params(
                        TB, Hn, True, ("parallel", "arbitrary")),
                )(x_p, r_p, self.Wi_p, self.Wr_p, self.aux_p, self.bg)

                out = pl.pallas_call(
                    _rfl_blend_kernel,
                    out_shape=out_shape_full,
                    grid=(nb, nc),
                    in_specs=[
                        _spec((TB, Hn), lambda i, j: (i, j)),
                        _spec((TB, Hn), lambda i, j: (i, j)),
                        _spec((TB, 1), lambda i, j: (i, 0)),
                    ],
                    out_specs=pl.BlockSpec((TB, Hn), lambda i, j: (i, j)),
                    compiler_params=self._compiler_params(
                        TB, Hn, True, ("parallel", "parallel")),
                )(h_i, echo_i, logit)

        if Bp != B or Hp != self.hidden_dim:
            out = out[:B, :self.hidden_dim]
        return out


def _reference(block, x, r=None):
    """Pure-JAX f32 reference replicating the PyTorch forward."""
    h = jnp.tanh(x @ block.Wi + block.bi)
    if r is None:
        return h
    echo = jnp.tanh(r @ block.Wr + block.br)
    logit = h @ block.Wg_h.T + echo @ block.Wg_e.T + block.bg
    w = jax.nn.sigmoid(logit)
    return h * w + echo * (1.0 - w)


if __name__ == "__main__":
    key = jax.random.PRNGKey(0)
    kp, kx, kr, kx2, kr2 = jax.random.split(key, 5)

    # 1) Small fused path, exact f32 (with and without past_resonance).
    B, I, H = 8, 16, 32
    x = jax.random.normal(kx, (B, I), jnp.float32)
    r = jax.random.normal(kr, (B, H), jnp.float32)
    blk = RFLBlockPallas(I, H, kp, param_dtype=jnp.float32)
    out_full = jax.block_until_ready(blk(x, r))
    out_proj = jax.block_until_ready(blk(x, None))
    assert out_full.shape == (B, H) and out_proj.shape == (B, H)
    assert jnp.allclose(out_full, _reference(blk, x, r), atol=1e-5, rtol=1e-5)
    assert jnp.allclose(out_proj, _reference(blk, x, None), atol=1e-5, rtol=1e-5)

    # 2) Unaligned batch (row-padding path), exact f32.
    B2 = 13
    x13 = jax.random.normal(kx2, (B2, I), jnp.float32)
    r13 = jax.random.normal(kr2, (B2, H), jnp.float32)
    out13 = jax.block_until_ready(blk(x13, r13))
    assert out13.shape == (B2, H)
    assert jnp.allclose(out13, _reference(blk, x13, r13), atol=1e-5, rtol=1e-5)

    # 3) Fully aligned shapes: pad / cast / slice are skipped entirely.
    kp2, kxa, kra = jax.random.split(jax.random.PRNGKey(2), 3)
    Ba, Ia, Ha = 16, 128, 128
    xa = jax.random.normal(kxa, (Ba, Ia), jnp.float32)
    ra = jax.random.normal(kra, (Ba, Ha), jnp.float32)
    blk_a = RFLBlockPallas(Ia, Ha, kp2, param_dtype=jnp.float32)
    out_a = jax.block_until_ready(blk_a(xa, ra))
    assert out_a.shape == (Ba, Ha)
    assert jnp.allclose(out_a, _reference(blk_a, xa, ra), atol=1e-5, rtol=1e-5)

    # 4) Forced column-tiled two-pass path (large-hidden / v7x VMEM fallback).
    kp3, kx3, kr3 = jax.random.split(jax.random.PRNGKey(1), 3)
    B3, I3, H3 = 24, 48, 256
    x3 = jax.random.normal(kx3, (B3, I3), jnp.float32)
    r3 = jax.random.normal(kr3, (B3, H3), jnp.float32)
    blk3 = RFLBlockPallas(I3, H3, kp3, param_dtype=jnp.float32, hidden_tile=128)
    out3 = jax.block_until_ready(blk3(x3, r3))
    out3p = jax.block_until_ready(blk3(x3, None))
    assert out3.shape == (B3, H3) and out3p.shape == (B3, H3)
    assert jnp.allclose(out3, _reference(blk3, x3, r3), atol=1e-5, rtol=1e-5)
    assert jnp.allclose(out3p, _reference(blk3, x3, None), atol=1e-5, rtol=1e-5)

    # 5) Default bf16 weights/activations + bf16 output (looser tolerance;
    #    matmuls still accumulate in f32 and the epilogue is f32).
    blk_bf = RFLBlockPallas(I, H, kp, out_dtype=jnp.bfloat16)
    out_bf = jax.block_until_ready(blk_bf(x, r))
    assert out_bf.shape == (B, H) and out_bf.dtype == jnp.bfloat16
    assert jnp.allclose(out_bf.astype(jnp.float32), _reference(blk_bf, x, r),
                        atol=3e-2, rtol=3e-2)

    print("KERNEL_OK")
</pallas_src>

<mosaic_0001>
module attributes {stable_mosaic.version = 11 : i64} {
  func.func @_rfl_full_kernel(%arg0: i32, %arg1: memref<8x128xf32, #tpu.memory_space<vmem>>, %arg2: memref<8x128xf32, #tpu.memory_space<vmem>>, %arg3: memref<128x128xf32, #tpu.memory_space<vmem>>, %arg4: memref<128x128xf32, #tpu.memory_space<vmem>>, %arg5: memref<4x128xf32, #tpu.memory_space<vmem>>, %arg6: memref<1x1xf32, #tpu.memory_space<smem>>, %arg7: memref<8x128xf32, #tpu.memory_space<vmem>>) attributes {dimension_semantics = [#tpu.dimension_semantics<parallel>], iteration_bounds = array<i64: 1>, scalar_prefetch = 0 : i64, scratch_operands = 0 : i64, tpu.core_type = #tpu.core_type<tc>, window_params = [{transform_indices = @transform_0, window_bounds = array<i64: 8, 128>}, {transform_indices = @transform_1, window_bounds = array<i64: 8, 128>}, {pipeline_mode = #tpu.pipeline_mode<synchronous>, transform_indices = @transform_2, window_bounds = array<i64: 128, 128>}, {pipeline_mode = #tpu.pipeline_mode<synchronous>, transform_indices = @transform_3, window_bounds = array<i64: 128, 128>}, {pipeline_mode = #tpu.pipeline_mode<synchronous>, transform_indices = @transform_4, window_bounds = array<i64: 4, 128>}, {transform_indices = @transform_5, window_bounds = array<i64: 1, 1>}, {transform_indices = @transform_6, window_bounds = array<i64: 8, 128>}]} {
    %c0 = arith.constant 0 : index
    %c0_0 = arith.constant 0 : index
    %0 = vector.load %arg5[%c0, %c0_0] : memref<4x128xf32, #tpu.memory_space<vmem>>, vector<4x128xf32>
    %c0_1 = arith.constant 0 : index
    %c0_2 = arith.constant 0 : index
    %1 = vector.load %arg1[%c0_1, %c0_2] : memref<8x128xf32, #tpu.memory_space<vmem>>, vector<8x128xf32>
    %c0_3 = arith.constant 0 : index
    %c0_4 = arith.constant 0 : index
    %2 = vector.load %arg3[%c0_3, %c0_4] : memref<128x128xf32, #tpu.memory_space<vmem>>, vector<128x128xf32>
    %cst = arith.constant dense<0.000000e+00> : vector<8x128xf32>
    %3 = tpu.matmul %1, %2, %cst {dimension_numbers = #tpu.dot_dimension_numbers<[1], [0], [0], [1], [0, 0, 1, 1], [], []>} : vector<8x128xf32>, vector<128x128xf32>, vector<8x128xf32> -> vector<8x128xf32>
    %4 = vector.extract_strided_slice %0 {offsets = [0, 0], sizes = [1, 128], strides = [1, 1]} : vector<4x128xf32> to vector<1x128xf32>
    %5 = vector.broadcast %4 : vector<1x128xf32> to vector<8x128xf32>
    %6 = arith.addf %3, %5 : vector<8x128xf32>
    %7 = math.tanh %6 : vector<8x128xf32>
    %c0_5 = arith.constant 0 : index
    %c0_6 = arith.constant 0 : index
    %8 = vector.load %arg2[%c0_5, %c0_6] : memref<8x128xf32, #tpu.memory_space<vmem>>, vector<8x128xf32>
    %c0_7 = arith.constant 0 : index
    %c0_8 = arith.constant 0 : index
    %9 = vector.load %arg4[%c0_7, %c0_8] : memref<128x128xf32, #tpu.memory_space<vmem>>, vector<128x128xf32>
    %cst_9 = arith.constant dense<0.000000e+00> : vector<8x128xf32>
    %10 = tpu.matmul %8, %9, %cst_9 {dimension_numbers = #tpu.dot_dimension_numbers<[1], [0], [0], [1], [0, 0, 1, 1], [], []>} : vector<8x128xf32>, vector<128x128xf32>, vector<8x128xf32> -> vector<8x128xf32>
    %11 = vector.extract_strided_slice %0 {offsets = [1, 0], sizes = [1, 128], strides = [1, 1]} : vector<4x128xf32> to vector<1x128xf32>
    %12 = vector.broadcast %11 : vector<1x128xf32> to vector<8x128xf32>
    %13 = arith.addf %10, %12 : vector<8x128xf32>
    %14 = math.tanh %13 : vector<8x128xf32>
    %15 = vector.extract_strided_slice %0 {offsets = [2, 0], sizes = [1, 128], strides = [1, 1]} : vector<4x128xf32> to vector<1x128xf32>
    %16 = vector.broadcast %15 : vector<1x128xf32> to vector<8x128xf32>
    %17 = arith.mulf %7, %16 : vector<8x128xf32>
    %18 = vector.extract_strided_slice %0 {offsets = [3, 0], sizes = [1, 128], strides = [1, 1]} : vector<4x128xf32> to vector<1x128xf32>
    %19 = vector.broadcast %18 : vector<1x128xf32> to vector<8x128xf32>
    %20 = arith.mulf %14, %19 : vector<8x128xf32>
    %21 = arith.addf %17, %20 : vector<8x128xf32>
    %cst_10 = arith.constant dense<0.000000e+00> : vector<8xf32>
    %22 = vector.multi_reduction <add>, %21, %cst_10 [1] : vector<8x128xf32> to vector<8xf32>
    %23 = vector.shape_cast %22 : vector<8xf32> to vector<8x1xf32>
    %c0_11 = arith.constant 0 : index
    %c0_12 = arith.constant 0 : index
    %24 = memref.load %arg6[%c0_11, %c0_12] : memref<1x1xf32, #tpu.memory_space<smem>>
    %25 = vector.broadcast %24 : f32 to vector<8x1xf32>
    %26 = arith.addf %23, %25 : vector<8x1xf32>
    %27 = arith.negf %26 : vector<8x1xf32>
    %28 = math.exp %27 : vector<8x1xf32>
    %cst_13 = arith.constant 1.000000e+00 : f32
    %29 = vector.broadcast %cst_13 : f32 to vector<8x1xf32>
    %30 = arith.addf %29, %28 : vector<8x1xf32>
    %31 = arith.divf %29, %30 : vector<8x1xf32>
    %32 = arith.subf %7, %14 : vector<8x128xf32>
    %33 = vector.broadcast %31 : vector<8x1xf32> to vector<8x128xf32>
    %34 = arith.mulf %32, %33 : vector<8x128xf32>
    %35 = arith.addf %14, %34 : vector<8x128xf32>
    %c0_14 = arith.constant 0 : index
    %c0_15 = arith.constant 0 : index
    %36 = vector.load %arg7[%c0_14, %c0_15] : memref<8x128xf32, #tpu.memory_space<vmem>>, vector<8x128xf32>
    tpu.vector_store %arg7[%c0_14, %c0_15], %35 {strides = array<i32>} : memref<8x128xf32, #tpu.memory_space<vmem>>, vector<8x128xf32>,
    return
  }
  func.func @transform_0(%arg0: i32) -> (i32, i32) {
    %c0_i32 = arith.constant 0 : i32
    %c0_i32_0 = arith.constant 0 : i32
    return %arg0, %c0_i32 : i32, i32
  }
  func.func @transform_1(%arg0: i32) -> (i32, i32) {
    %c0_i32 = arith.constant 0 : i32
    %c0_i32_0 = arith.constant 0 : i32
    return %arg0, %c0_i32 : i32, i32
  }
  func.func @transform_2(%arg0: i32) -> (i32, i32) {
    %c0_i32 = arith.constant 0 : i32
    %c0_i32_0 = arith.constant 0 : i32
    %c0_i32_1 = arith.constant 0 : i32
    return %c0_i32, %c0_i32_0 : i32, i32
  }
  func.func @transform_3(%arg0: i32) -> (i32, i32) {
    %c0_i32 = arith.constant 0 : i32
    %c0_i32_0 = arith.constant 0 : i32
    %c0_i32_1 = arith.constant 0 : i32
    return %c0_i32, %c0_i32_0 : i32, i32
  }
  func.func @transform_4(%arg0: i32) -> (i32, i32) {
    %c0_i32 = arith.constant 0 : i32
    %c0_i32_0 = arith.constant 0 : i32
    %c0_i32_1 = arith.constant 0 : i32
    return %c0_i32, %c0_i32_0 : i32, i32
  }
  func.func @transform_5(%arg0: i32) -> (i32, i32) {
    %c0_i32 = arith.constant 0 : i32
    %c0_i32_0 = arith.constant 0 : i32
    %c0_i32_1 = arith.constant 0 : i32
    return %c0_i32, %c0_i32_0 : i32, i32
  }
  func.func @transform_6(%arg0: i32) -> (i32, i32) {
    %c0_i32 = arith.constant 0 : i32
    %c0_i32_0 = arith.constant 0 : i32
    return %arg0, %c0_i32 : i32, i32
  }
}

</mosaic_0001>

<llo_original>
// kernel: tpu_custom_call.1
$region0: #{tpu_custom_call.1}
  #allocation0 [shape = 'u32[]', space=smem, size = 0x4, offset = 0x4, fixed_abs, tag = 'smem constant byte address 0x4 - core index']
  #allocation1 [shape = 'u32[144,128]{1,0:T(1,128)}', space=vmem, size = 0x12000, scoped, tag = 'internal scratch']
  #allocation2 [shape = 'f32[1,1]{1,0:T(1,128)S(6)}', space=smem, size = 0x200, scoped, tag = 'scoped memory for tpu_custom_call.1']
  %s0 = inlined_call_operand.hbm [shape: f32[8,128], index: 0, kind: input, shape index: {}]
  %s1 = inlined_call_operand.hbm [shape: f32[8,128], index: 1, kind: input, shape index: {}]
  %s2 = inlined_call_operand.hbm [shape: f32[128,128], index: 2, kind: input, shape index: {}]
  %s3 = inlined_call_operand.hbm [shape: f32[128,128], index: 3, kind: input, shape index: {}]
  %s4 = inlined_call_operand.vmem [shape: f32[4,128], index: 4, kind: input, shape index: {}]
  %s5 = inlined_call_operand.<no memory space> [shape: f32[1,1], index: 5, kind: input, shape index: {}]
  %s6 = inlined_call_operand.hbm [shape: f32[8,128], index: 6, kind: output, shape index: {}]
  %s7 = sld [smem:[#allocation0]]
  $region50: #{tpu_custom_call.1} parent=0
    _
  %s9 = ssub.s32 1, %s7
  %s10 = scalar_select 0, %s9, %s7
  %11 = sst [smem:[#allocation2]] %s5
  $region1: #{tpu_custom_call.1} parent=0
    #allocation3 [shape = 'u8[4096]{0}', space=vmem, size = 0x1000, scoped, tag = 'input window, operand 0, single buffered']
    #allocation4 [shape = 's32[1]{0}', space=sflag, size = 0x4, scoped, tag = 'scoped memory for tpu_custom_call.1']
    #allocation5 [shape = 's32[1]{0}', space=sflag, size = 0x4, scoped, tag = 'scoped memory for tpu_custom_call.1']
    #allocation6 [shape = 'u8[4096]{0}', space=vmem, size = 0x1000, scoped, tag = 'input window, operand 1, single buffered']
    #allocation7 [shape = 's32[1]{0}', space=sflag, size = 0x4, scoped, tag = 'scoped memory for tpu_custom_call.1']
    #allocation8 [shape = 'u8[65536]{0}', space=vmem, size = 0x10000, scoped, tag = 'input window, operand 2, single buffered']
    #allocation9 [shape = 'u8[65536]{0}', space=vmem, size = 0x10000, scoped, tag = 'input window, operand 3, single buffered']
    #allocation10 [shape = 's32[1]{0}', space=sflag, size = 0x4, scoped, tag = 'scoped memory for tpu_custom_call.1']
    #allocation11 [shape = 'u8[4096]{0}', space=vmem, size = 0x1000, scoped, tag = 'output window, operand 0, single buffered']
    %12 = vsyncpa [#allocation4], 0
    %13 = vsyncpa [#allocation7], 0
    %14 = vsyncpa [#allocation10], 0
    %15 = vsyncpa [#allocation5], 0
    // Predicated region
    $region2: #{tpu_custom_call.1} parent=1 // pred_check
      _
    $region3: #{tpu_custom_call.1} parent=1 // pred_check_branch
      %17 = sbr.rel (0) target = $region5
    $region4: #{tpu_custom_call.1} parent=1 // pred_region
      %s19 = ssub.s32 128, 128
      %20 = vsyncadd [#allocation4], %s19
      %s22 = sshll.u32 [#allocation3], 4
      %s23 = int_to_ptr.vmem [resolvable:$true] %s22
      %25 = dma.hbm_to_vmem [thread:$0]  %s0, 128, %s23, [#allocation4]
    $region5: #{tpu_custom_call.1} parent=1 // pred_fallthru
      _
    // Predicated region
    $region6: #{tpu_custom_call.1} parent=1 // pred_check
      _
    $region7: #{tpu_custom_call.1} parent=1 // pred_check_branch
      %27 = sbr.rel (0) target = $region9
    $region8: #{tpu_custom_call.1} parent=1 // pred_region
      %s29 = ssub.s32 128, 128
      %30 = vsyncadd [#allocation7], %s29
      %s32 = sshll.u32 [#allocation6], 4
      %s33 = int_to_ptr.vmem [resolvable:$true] %s32
      %35 = dma.hbm_to_vmem [thread:$0]  %s1, 128, %s33, [#allocation7]
    $region9: #{tpu_custom_call.1} parent=1 // pred_fallthru
      _
    // Predicated region
    $region10: #{tpu_custom_call.1} parent=1 // pred_check
      _
    $region11: #{tpu_custom_call.1} parent=1 // pred_check_branch
      %37 = sbr.rel (0) target = $region13
    $region12: #{tpu_custom_call.1} parent=1 // pred_region
      %s39 = ssub.s32 2048, 2048
      %40 = vsyncadd [#allocation7], %s39
      %s41 = sshll.u32 [#allocation8], 4
      %s42 = int_to_ptr.vmem [resolvable:$true] %s41
      %47 = dma.hbm_to_vmem [thread:$0]  %s2, 2048, %s42, [#allocation7], 128, 128, 8
    $region13: #{tpu_custom_call.1} parent=1 // pred_fallthru
      _
    // Predicated region
    $region14: #{tpu_custom_call.1} parent=1 // pred_check
      _
    $region15: #{tpu_custom_call.1} parent=1 // pred_check_branch
      %49 = sbr.rel (0) target = $region17
    $region16: #{tpu_custom_call.1} parent=1 // pred_region
      %s51 = ssub.s32 2048, 2048
      %52 = vsyncadd [#allocation10], %s51
      %s53 = sshll.u32 [#allocation9], 4
      %s54 = int_to_ptr.vmem [resolvable:$true] %s53
      %59 = dma.hbm_to_vmem [thread:$0]  %s3, 2048, %s54, [#allocation10], 128, 128, 8
    $region17: #{tpu_custom_call.1} parent=1 // pred_fallthru
      _
    // Predicated region
    $region18: #{tpu_custom_call.1} parent=1 // pred_check
      _
    $region19: #{tpu_custom_call.1} parent=1 // pred_check_branch
      %61 = sbr.rel (0) target = $region21
    $region20: #{tpu_custom_call.1} parent=1 // pred_region
      _
    $region21: #{tpu_custom_call.1} parent=1 // pred_fallthru
      _
    // Predicated region
    $region22: #{tpu_custom_call.1} parent=1 // pred_check
      _
    $region23: #{tpu_custom_call.1} parent=1 // pred_check_branch
      %63 = sbr.rel (0) target = $region25
    $region24: #{tpu_custom_call.1} parent=1 // pred_region
      _
    $region25: #{tpu_custom_call.1} parent=1 // pred_fallthru
      _
    // Predicated region
    $region26: #{tpu_custom_call.1} parent=1 // pred_check
      _
    $region27: #{tpu_custom_call.1} parent=1 // pred_check_branch
      %65 = sbr.rel (0) target = $region29
    $region28: #{tpu_custom_call.1} parent=1 // pred_region
      %66 = dma.done [#allocation4], 128
    $region29: #{tpu_custom_call.1} parent=1 // pred_fallthru
      _
    // Predicated region
    $region30: #{tpu_custom_call.1} parent=1 // pred_check
      _
    $region31: #{tpu_custom_call.1} parent=1 // pred_check_branch
      %68 = sbr.rel (0) target = $region33
    $region32: #{tpu_custom_call.1} parent=1 // pred_region
      %69 = dma.done [#allocation7], 128
    $region33: #{tpu_custom_call.1} parent=1 // pred_fallthru
      _
    // Predicated region
    $region34: #{tpu_custom_call.1} parent=1 // pred_check
      _
    $region35: #{tpu_custom_call.1} parent=1 // pred_check_branch
      %71 = sbr.rel (0) target = $region37
    $region36: #{tpu_custom_call.1} parent=1 // pred_region
      %72 = dma.done [#allocation7], 2048
    $region37: #{tpu_custom_call.1} parent=1 // pred_fallthru
      _
    // Predicated region
    $region38: #{tpu_custom_call.1} parent=1 // pred_check
      _
    $region39: #{tpu_custom_call.1} parent=1 // pred_check_branch
      %74 = sbr.rel (0) target = $region41
    $region40: #{tpu_custom_call.1} parent=1 // pred_region
      %75 = dma.done [#allocation10], 2048
    $region41: #{tpu_custom_call.1} parent=1 // pred_fallthru
      _
    %v76 = vld [vmem:[%s4] sm:$0xf]
    %v77 = vld [vmem:[#allocation3] sm:$0xff]
    %v78 = vld [vmem:[#allocation8] sm:$0xff]
    %v79 = vld [vmem:[#allocation8 + $0x8] sm:$0xff]
    %v80 = vld [vmem:[#allocation8 + $0x10] sm:$0xff]
    %v81 = vld [vmem:[#allocation8 + $0x18] sm:$0xff]
    %v82 = vld [vmem:[#allocation8 + $0x20] sm:$0xff]
    %v83 = vld [vmem:[#allocation8 + $0x28] sm:$0xff]
    %v84 = vld [vmem:[#allocation8 + $0x30] sm:$0xff]
    %v85 = vld [vmem:[#allocation8 + $0x38] sm:$0xff]
    %v86 = vld [vmem:[#allocation8 + $0x40] sm:$0xff]
    %v87 = vld [vmem:[#allocation8 + $0x48] sm:$0xff]
    %v88 = vld [vmem:[#allocation8 + $0x50] sm:$0xff]
    %v89 = vld [vmem:[#allocation8 + $0x58] sm:$0xff]
    %v90 = vld [vmem:[#allocation8 + $0x60] sm:$0xff]
    %v91 = vld [vmem:[#allocation8 + $0x68] sm:$0xff]
    %v92 = vld [vmem:[#allocation8 + $0x70] sm:$0xff]
    %v93 = vld [vmem:[#allocation8 + $0x78] sm:$0xff]
    %v94 = vlaneseq
    %v95 = vshrl.u32 %v94, 7
    %v96 = vsub.s32 0, %v95
    %v97 = vrot.slane %v76, %v96
    %98 = vmatprep.subr.mxu0 0.0
    %99 = vmatpush1.msra.mxu0 %v78
    %100 = vmatprep.subr.mxu0 0.0
    %101 = vmatpush1.msra.mxu0 %v79
    %102 = vmatprep.subr.mxu0 0.0
    %103 = vmatpush1.msra.mxu0 %v80
    %104 = vmatprep.subr.mxu0 0.0
    %105 = vmatpush1.msra.mxu0 %v81
    %106 = vmatprep.subr.mxu0 0.0
    %107 = vmatpush1.msra.mxu0 %v82
    %108 = vmatprep.subr.mxu0 0.0
    %109 = vmatpush1.msra.mxu0 %v83
    %110 = vmatprep.subr.mxu0 0.0
    %111 = vmatpush1.msra.mxu0 %v84
    %112 = vmatprep.subr.mxu0 0.0
    %113 = vmatpush1.msra.mxu0 %v85
    %114 = vmatprep.subr.mxu0 0.0
    %115 = vmatpush1.msra.mxu0 %v86
    %116 = vmatprep.subr.mxu0 0.0
    %117 = vmatpush1.msra.mxu0 %v87
    %118 = vmatprep.subr.mxu0 0.0
    %119 = vmatpush1.msra.mxu0 %v88
    %120 = vmatprep.subr.mxu0 0.0
    %121 = vmatpush1.msra.mxu0 %v89
    %122 = vmatprep.subr.mxu0 0.0
    %123 = vmatpush1.msra.mxu0 %v90
    %124 = vmatprep.subr.mxu0 0.0
    %125 = vmatpush1.msra.mxu0 %v91
    %126 = vmatprep.subr.mxu0 0.0
    %127 = vmatpush1.msra.mxu0 %v92
    %128 = vmatprep.subr.mxu0 0.0
    %129 = vmatpush1.msra.mxu0 %v93
    %130 = vmatprep.subr.mxu0 0.0
    %131 = vmatpush1.msra.mxu0 0.0
    %132 = vmatprep.subr.mxu0 0.0
    %133 = vmatpush1.msra.mxu0 0.0
    %134 = vmatprep.subr.mxu0 0.0
    %135 = vmatpush1.msra.mxu0 0.0
    %136 = vmatprep.subr.mxu0 0.0
    %137 = vmatpush1.msra.mxu0 0.0
    %138 = vmatprep.subr.mxu0 0.0
    %139 = vmatpush1.msra.mxu0 0.0
    %140 = vmatprep.subr.mxu0 0.0
    %141 = vmatpush1.msra.mxu0 0.0
    %142 = vmatprep.subr.mxu0 0.0
    %143 = vmatpush1.msra.mxu0 0.0
    %144 = vmatprep.subr.mxu0 0.0
    %145 = vmatpush1.msra.mxu0 0.0
    %146 = vmatprep.subr.mxu0 0.0
    %147 = vmatpush1.msra.mxu0 0.0
    %148 = vmatprep.subr.mxu0 0.0
    %149 = vmatpush1.msra.mxu0 0.0
    %150 = vmatprep.subr.mxu0 0.0
    %151 = vmatpush1.msra.mxu0 0.0
    %152 = vmatprep.subr.mxu0 0.0
    %153 = vmatpush1.msra.mxu0 0.0
    %154 = vmatprep.subr.mxu0 0.0
    %155 = vmatpush1.msra.mxu0 0.0
    %156 = vmatprep.subr.mxu0 0.0
    %157 = vmatpush1.msra.mxu0 0.0
    %158 = vmatprep.subr.mxu0 0.0
    %159 = vmatpush1.msra.mxu0 0.0
    %160 = vmatprep.subr.mxu0 0.0
    %161 = vmatpush1.msra.mxu0 0.0
    %162 = vmatprep.mubr.f32.mxu0 0.0
    %163 = vmatmul.mubr.f32.gmra.mrb[0].mxu0 %v77
    %v164 = vpop.f32.mrb[0].mxu0
    %v165 = vadd.f32 %v97, %v164
    %v166 = vpop.f32.mrb[0].mxu0
    %167 = vdwg.mxu0
    %v168 = vtanh.pop %v165
    %v169 = vld [vmem:[#allocation6] sm:$0xff]
    %v170 = vld [vmem:[#allocation9] sm:$0xff]
    %v171 = vld [vmem:[#allocation9 + $0x8] sm:$0xff]
    %v172 = vld [vmem:[#allocation9 + $0x10] sm:$0xff]
    %v173 = vld [vmem:[#allocation9 + $0x18] sm:$0xff]
    %v174 = vld [vmem:[#allocation9 + $0x20] sm:$0xff]
    %v175 = vld [vmem:[#allocation9 + $0x28] sm:$0xff]
    %v176 = vld [vmem:[#allocation9 + $0x30] sm:$0xff]
    %v177 = vld [vmem:[#allocation9 + $0x38] sm:$0xff]
    %v178 = vld [vmem:[#allocation9 + $0x40] sm:$0xff]
    %v179 = vld [vmem:[#allocation9 + $0x48] sm:$0xff]
    %v180 = vld [vmem:[#allocation9 + $0x50] sm:$0xff]
    %v181 = vld [vmem:[#allocation9 + $0x58] sm:$0xff]
    %v182 = vld [vmem:[#allocation9 + $0x60] sm:$0xff]
    %v183 = vld [vmem:[#allocation9 + $0x68] sm:$0xff]
    %v184 = vld [vmem:[#allocation9 + $0x70] sm:$0xff]
    %v185 = vld [vmem:[#allocation9 + $0x78] sm:$0xff]
    %v186 = vlaneseq
    %v187 = vshrl.u32 %v186, 7
    %v188 = vsub.s32 1, %v187
    %v189 = vrot.slane %v76, %v188
    %190 = vmatprep.subr.mxu0 0.0
    %191 = vmatpush1.msra.mxu0 %v170
    %192 = vmatprep.subr.mxu0 0.0
    %193 = vmatpush1.msra.mxu0 %v171
    %194 = vmatprep.subr.mxu0 0.0
    %195 = vmatpush1.msra.mxu0 %v172
    %196 = vmatprep.subr.mxu0 0.0
    %197 = vmatpush1.msra.mxu0 %v173
    %198 = vmatprep.subr.mxu0 0.0
    %199 = vmatpush1.msra.mxu0 %v174
    %200 = vmatprep.subr.mxu0 0.0
    %201 = vmatpush1.msra.mxu0 %v175
    %202 = vmatprep.subr.mxu0 0.0
    %203 = vmatpush1.msra.mxu0 %v176
    %204 = vmatprep.subr.mxu0 0.0
    %205 = vmatpush1.msra.mxu0 %v177
    %206 = vmatprep.subr.mxu0 0.0
    %207 = vmatpush1.msra.mxu0 %v178
    %208 = vmatprep.subr.mxu0 0.0
    %209 = vmatpush1.msra.mxu0 %v179
    %210 = vmatprep.subr.mxu0 0.0
    %211 = vmatpush1.msra.mxu0 %v180
    %212 = vmatprep.subr.mxu0 0.0
    %213 = vmatpush1.msra.mxu0 %v181
    %214 = vmatprep.subr.mxu0 0.0
    %215 = vmatpush1.msra.mxu0 %v182
    %216 = vmatprep.subr.mxu0 0.0
    %217 = vmatpush1.msra.mxu0 %v183
    %218 = vmatprep.subr.mxu0 0.0
    %219 = vmatpush1.msra.mxu0 %v184
    %220 = vmatprep.subr.mxu0 0.0
    %221 = vmatpush1.msra.mxu0 %v185
    %222 = vmatprep.subr.mxu0 0.0
    %223 = vmatpush1.msra.mxu0 0.0
    %224 = vmatprep.subr.mxu0 0.0
    %225 = vmatpush1.msra.mxu0 0.0
    %226 = vmatprep.subr.mxu0 0.0
    %227 = vmatpush1.msra.mxu0 0.0
    %228 = vmatprep.subr.mxu0 0.0
    %229 = vmatpush1.msra.mxu0 0.0
    %230 = vmatprep.subr.mxu0 0.0
    %231 = vmatpush1.msra.mxu0 0.0
    %232 = vmatprep.subr.mxu0 0.0
    %233 = vmatpush1.msra.mxu0 0.0
    %234 = vmatprep.subr.mxu0 0.0
    %235 = vmatpush1.msra.mxu0 0.0
    %236 = vmatprep.subr.mxu0 0.0
    %237 = vmatpush1.msra.mxu0 0.0
    %238 = vmatprep.subr.mxu0 0.0
    %239 = vmatpush1.msra.mxu0 0.0
    %240 = vmatprep.subr.mxu0 0.0
    %241 = vmatpush1.msra.mxu0 0.0
    %242 = vmatprep.subr.mxu0 0.0
    %243 = vmatpush1.msra.mxu0 0.0
    %244 = vmatprep.subr.mxu0 0.0
    %245 = vmatpush1.msra.mxu0 0.0
    %246 = vmatprep.subr.mxu0 0.0
    %247 = vmatpush1.msra.mxu0 0.0
    %248 = vmatprep.subr.mxu0 0.0
    %249 = vmatpush1.msra.mxu0 0.0
    %250 = vmatprep.subr.mxu0 0.0
    %251 = vmatpush1.msra.mxu0 0.0
    %252 = vmatprep.subr.mxu0 0.0
    %253 = vmatpush1.msra.mxu0 0.0
    %254 = vmatprep.mubr.f32.mxu0 0.0
    %255 = vmatmul.mubr.f32.gmra.mrb[0].mxu0 %v169
    %v256 = vpop.f32.mrb[0].mxu0
    %v257 = vadd.f32 %v189, %v256
    %v258 = vpop.f32.mrb[0].mxu0
    %259 = vdwg.mxu0
    %v260 = vtanh.pop %v257
    %v261 = vlaneseq
    %v262 = vshrl.u32 %v261, 7
    %v263 = vsub.s32 2, %v262
    %v264 = vrot.slane %v76, %v263
    %v265 = vmul.f32 %v168, %v264
    %v266 = vlaneseq
    %v267 = vshrl.u32 %v266, 7
    %v268 = vsub.s32 3, %v267
    %v269 = vrot.slane %v76, %v268
    %v270 = vmul.f32 %v260, %v269
    %v271 = vadd.f32 %v265, %v270
    %272 = vadd.xlane.f32.xlu0 %v271
    %v273 = vpop.xlane.xlu0 %272
    %s274 = sld [smem:[#allocation2]]
    %v275 = vstv %s274
    %v276 = vadd.f32 %v273, %v275
    %v277 = vxor.u32 %v276, 2147483648
    %v278 = vmul.f32 %v277, 1.442695
    %v279 = vpow.pop %v278
    %v280 = vadd.f32 %v279, 1.0
    %v281 = vrcp.pop %v280
    %v282 = vmul.f32 1.0, %v281
    %v283 = vsub.f32 %v168, %v260
    %v284 = vmul.f32 %v283, %v282
    %v285 = vadd.f32 %v260, %v284
    %286 = vst [vmem:[#allocation11] sm:$0xff] %v285
    // Predicated region
    $region42: #{tpu_custom_call.1} parent=1 // pred_check
      _
    $region43: #{tpu_custom_call.1} parent=1 // pred_check_branch
      %288 = sbr.rel (0) target = $region45
    $region44: #{tpu_custom_call.1} parent=1 // pred_region
      %s290 = ssub.s32 128, 128
      %291 = vsyncadd [#allocation5], %s290
      %s293 = sshll.u32 [#allocation11], 4
      %s294 = int_to_ptr.vmem [resolvable:$true] %s293
      %296 = dma.vmem_to_hbm [thread:$0]  %s294, 128, %s6, [#allocation5]
    $region45: #{tpu_custom_call.1} parent=1 // pred_fallthru
      _
    // Predicated region
    $region46: #{tpu_custom_call.1} parent=1 // pred_check
      _
    $region47: #{tpu_custom_call.1} parent=1 // pred_check_branch
      %298 = sbr.rel (0) target = $region49
    $region48: #{tpu_custom_call.1} parent=1 // pred_region
      %299 = dma.done [#allocation5], 128
    $region49: #{tpu_custom_call.1} parent=1 // pred_fallthru
      _
    %300 = vsyncpa [#allocation4], 1
    %301 = vsyncpa [#allocation7], 1
    %302 = vsyncpa [#allocation10], 1
    %303 = vsyncpa [#allocation5], 1

</llo_original>
